<compile_context>
chip_gen: v7x
topology: tpu7x:2x2x1
jax: 0.10.0
libtpu: 0.0.40
codegen_flags: <defaults>
</compile_context>

<pallas_src>
import functools

import jax
import jax.numpy as jnp
from jax import lax
from jax.experimental import pallas as pl
from jax.experimental.pallas import tpu as pltpu


def _round_up(a, b):
    return -(-a // b) * b


def _dice_sums_kernel(x_ref, y_ref, inter_ref, sp_ref, sg_ref, *,
                      num_classes, tile_s, s_total, n_inner):
    """Accumulate per-class intersect / sum_pred / sum_gt over one spatial tile."""
    p = pl.program_id(0)
    s = pl.program_id(1)

    @pl.when(s == 0)
    def _init():
        inter_ref[...] = jnp.zeros_like(inter_ref)
        sp_ref[...] = jnp.zeros_like(sp_ref)
        sg_ref[...] = jnp.zeros_like(sg_ref)

    start = (p * n_inner + s) * tile_s          # element offset of this tile in S

    x = x_ref[...].astype(jnp.float32)          # (B, C, TS); f32 accumulation
    yv = y_ref[...].astype(jnp.int32)           # (B, TS); wire dtype int8/int16/int32
    ch = lax.broadcasted_iota(jnp.int32, (1, num_classes, 1), 1)
    onehot = ch == yv[:, None, :]               # (B, C, TS) bool, no materialized one-hot

    is_full = start + tile_s <= s_total         # scalar: is this tile fully in-bounds?

    @pl.when(is_full)
    def _full_tile():
        inter_ref[...] += jnp.sum(jnp.where(onehot, x, 0.0), axis=2)[None]
        sp_ref[...] += jnp.sum(x, axis=2)[None]
        sg_ref[...] += jnp.sum(onehot.astype(jnp.float32), axis=2)[None]

    @pl.when(jnp.logical_not(is_full))
    def _ragged_tile():
        # Ragged tail tile (or fully out-of-range tile when num_parts does not
        # divide the tile count): mask garbage lanes out of ALL three sums.
        lane = lax.broadcasted_iota(jnp.int32, (1, 1, tile_s), 2)
        valid = lane < (s_total - start)                      # (1, 1, TS) bool
        xm = jnp.where(valid, x, 0.0)                         # select kills NaN/Inf garbage
        ohm = jnp.logical_and(onehot, valid)
        inter_ref[...] += jnp.sum(jnp.where(ohm, xm, 0.0), axis=2)[None]
        sp_ref[...] += jnp.sum(xm, axis=2)[None]
        sg_ref[...] += jnp.sum(ohm.astype(jnp.float32), axis=2)[None]


def _is_v7x():
    try:
        return "v7" in jax.devices()[0].device_kind.lower()
    except Exception:
        return False


def soft_dice_loss(x, y, *, apply_nonlin=None, smooth=1.0, batch_dice=False,
                   do_bg=True, tile_s=None, num_parts=None, core_parallel=None,
                   wire_dtype=None):
    """Forward pass of MemoryEfficientSoftDiceLoss.

    x: (B, C, *spatial) float probabilities (or logits if apply_nonlin given).
    y: (B, *spatial) or (B, 1, *spatial) integer class labels.
    Returns the scalar loss (single-process ddp, loss_mask=None).
    """
    x = jnp.asarray(x)
    in_dtype = x.dtype
    if apply_nonlin is not None:
        x = apply_nonlin(x)

    B, C = int(x.shape[0]), int(x.shape[1])
    S = 1
    for d in x.shape[2:]:
        S *= int(d)

    # TODO(synk): the x.shape == y.shape (pre-one-hot / soft target) branch and
    # the loss_mask argument are not wired; only the integer-label path is done.
    x3 = x.reshape(B, C, S)
    if not jnp.issubdtype(x3.dtype, jnp.floating):
        x3 = x3.astype(jnp.float32)
    # bf16-on-the-wire: if apply_nonlin promoted a narrow float input, go back
    # down for the DMA (the kernel upcasts to f32 before any arithmetic).
    if (wire_dtype is None and apply_nonlin is not None
            and jnp.issubdtype(in_dtype, jnp.floating)
            and jnp.dtype(in_dtype).itemsize < x3.dtype.itemsize):
        wire_dtype = in_dtype
    if wire_dtype is not None:
        x3 = x3.astype(wire_dtype)

    # Narrow label wire dtype (4x less label HBM traffic for the common small-C case).
    if C <= 127:
        y_dtype = jnp.int8
    elif C <= 32767:
        y_dtype = jnp.int16
    else:
        y_dtype = jnp.int32
    y2 = jnp.asarray(y).reshape(B, S).astype(y_dtype)

    x_item = x3.dtype.itemsize
    y_item = jnp.dtype(y_dtype).itemsize

    # ---- tile selection against the *padded* VMEM footprint -----------------
    # Sublane padding: second-to-last block dim pads to 8 * (4 / itemsize).
    c_pad = _round_up(C, 32 // x_item)
    b_pad = _round_up(B, 32 // y_item)
    per_ts_bytes = 2 * (B * c_pad * x_item + b_pad * y_item)   # double-buffered
    s_round = _round_up(S, 128)
    if tile_s is None:
        budget = 16 * 1024 * 1024                  # pipelined input-buffer budget
        ts = max(128, (budget // per_ts_bytes) // 128 * 128)
    else:
        ts = max(128, (int(tile_s) // 128) * 128)
    ts = min(ts, s_round)
    n_tiles = -(-S // ts)

    # ---- part split: only worth >1 when both v7x TensorCores can be engaged --
    if core_parallel is None:
        core_parallel = _is_v7x() if num_parts is None else False
    if num_parts is None:
        num_parts = 2 if (core_parallel and n_tiles >= 2) else 1
    num_parts = max(1, min(int(num_parts), n_tiles))
    core_parallel = bool(core_parallel) and num_parts > 1
    n_inner = -(-n_tiles // num_parts)

    kernel = functools.partial(_dice_sums_kernel, num_classes=C, tile_s=ts,
                               s_total=S, n_inner=n_inner)

    def x_map(p, s):
        return (0, 0, jnp.minimum(p * n_inner + s, n_tiles - 1))

    def y_map(p, s):
        return (0, jnp.minimum(p * n_inner + s, n_tiles - 1))

    acc_spec = pl.BlockSpec((1, B, C), lambda p, s: (p, 0, 0))

    cost = pl.CostEstimate(
        flops=6 * B * C * S,
        transcendentals=0,
        bytes_accessed=B * C * S * x_item + B * S * y_item
        + 3 * num_parts * B * C * 4,
    )

    first_sem = pltpu.CORE_PARALLEL if core_parallel else pltpu.ARBITRARY

    inter, sum_pred, sum_gt = pl.pallas_call(
        kernel,
        out_shape=[jax.ShapeDtypeStruct((num_parts, B, C), jnp.float32)] * 3,
        grid_spec=pl.GridSpec(
            grid=(num_parts, n_inner),
            in_specs=[
                pl.BlockSpec((B, C, ts), x_map),
                pl.BlockSpec((B, ts), y_map),
            ],
            out_specs=[acc_spec, acc_spec, acc_spec],
        ),
        compiler_params=pltpu.CompilerParams(
            dimension_semantics=(first_sem, pltpu.ARBITRARY),
            vmem_limit_bytes=32 * 1024 * 1024,
        ),
        cost_estimate=cost,
    )(x3, y2)

    # ---- tiny (num_parts, B, C) epilogue in plain JAX ----
    inter = inter.sum(0)
    sum_pred = sum_pred.sum(0)
    sum_gt = sum_gt.sum(0)
    if not do_bg:
        inter = inter[:, 1:]
        sum_pred = sum_pred[:, 1:]
        sum_gt = sum_gt[:, 1:]
    if batch_dice:
        # single process: AllGatherGrad is identity -> just sum over batch.
        inter = inter.sum(0)
        sum_pred = sum_pred.sum(0)
        sum_gt = sum_gt.sum(0)
    dc = (2.0 * inter + smooth) / jnp.clip(sum_gt + sum_pred + smooth, 1e-8)
    return -jnp.mean(dc)


def _reference_loss(x, y, smooth=1.0, batch_dice=False, do_bg=True):
    C = x.shape[1]
    y_onehot = jax.nn.one_hot(y, C, axis=1, dtype=jnp.float32)
    if not do_bg:
        x = x[:, 1:]
        y_onehot = y_onehot[:, 1:]
    axes = tuple(range(2, x.ndim))
    intersect = jnp.sum(x * y_onehot, axis=axes)
    sum_pred = jnp.sum(x, axis=axes)
    sum_gt = jnp.sum(y_onehot, axis=axes)
    if batch_dice:
        intersect = intersect.sum(0)
        sum_pred = sum_pred.sum(0)
        sum_gt = sum_gt.sum(0)
    dc = (2.0 * intersect + smooth) / jnp.clip(sum_gt + sum_pred + smooth, 1e-8)
    return -jnp.mean(dc)


if __name__ == "__main__":
    key = jax.random.PRNGKey(0)
    kx, ky, kx2, ky2 = jax.random.split(key, 4)
    B, C, H, W = 2, 4, 16, 16

    # x: probabilities (apply_nonlin=None means x is already a probability map);
    # y: integer class-label map (scatter_ one-hot branch of the module).
    x = jax.nn.softmax(jax.random.normal(kx, (B, C, H, W), jnp.float32), axis=1)
    y = jax.random.randint(ky, (B, H, W), 0, C, jnp.int32)

    # 1) default path (auto tile size / auto part count)
    ref = _reference_loss(x, y, smooth=1.0)
    loss = jax.block_until_ready(soft_dice_loss(x, y, smooth=1.0))
    assert jnp.allclose(loss, ref, atol=1e-5, rtol=1e-5), (loss, ref)

    # 2) forced small tiles + 2 serial parts -> exercises the part split
    loss_p = jax.block_until_ready(
        soft_dice_loss(x, y, smooth=1.0, tile_s=128, num_parts=2,
                       core_parallel=False))
    assert jnp.allclose(loss_p, ref, atol=1e-5, rtol=1e-5), (loss_p, ref)

    # 3) odd spatial size -> ragged tail tile masked in-kernel (no jnp.pad),
    #    plus batch_dice=True / do_bg=False variants
    H2, W2 = 20, 20
    x2 = jax.nn.softmax(jax.random.normal(kx2, (B, C, H2, W2), jnp.float32), axis=1)
    y2 = jax.random.randint(ky2, (B, H2, W2), 0, C, jnp.int32)
    ref2 = _reference_loss(x2, y2, smooth=1.0, batch_dice=True, do_bg=False)
    loss2 = jax.block_until_ready(
        soft_dice_loss(x2, y2, smooth=1.0, batch_dice=True, do_bg=False,
                       tile_s=128, num_parts=1))
    assert jnp.allclose(loss2, ref2, atol=1e-5, rtol=1e-5), (loss2, ref2)

    # 4) num_parts that does not divide the tile count -> fully-masked trailing
    #    tiles via the clamped index map + in-kernel valid mask
    ref2_full = _reference_loss(x2, y2, smooth=1.0)
    loss3 = jax.block_until_ready(
        soft_dice_loss(x2, y2, smooth=1.0, tile_s=128, num_parts=3,
                       core_parallel=False))
    assert jnp.allclose(loss3, ref2_full, atol=1e-5, rtol=1e-5), (loss3, ref2_full)

    # 5) bf16 on the wire (halved x HBM traffic), f32 accumulation in-kernel
    loss_bf16 = jax.block_until_ready(
        soft_dice_loss(x2.astype(jnp.bfloat16), y2, smooth=1.0, tile_s=128))
    assert jnp.allclose(loss_bf16, ref2_full, atol=1e-2, rtol=1e-2), (loss_bf16, ref2_full)

    print("KERNEL_OK")
</pallas_src>

<mosaic_0001>
module attributes {stable_mosaic.version = 11 : i64} {
  func.func @_dice_sums_kernel(%arg0: i32, %arg1: i32, %arg2: memref<2x4x256xf32, #tpu.memory_space<vmem>>, %arg3: memref<2x256xi8, #tpu.memory_space<vmem>>, %arg4: memref<1x2x4xf32, #tpu.memory_space<vmem>>, %arg5: memref<1x2x4xf32, #tpu.memory_space<vmem>>, %arg6: memref<1x2x4xf32, #tpu.memory_space<vmem>>) attributes {dimension_semantics = [#tpu.dimension_semantics<arbitrary>, #tpu.dimension_semantics<arbitrary>], iteration_bounds = array<i64: 1, 1>, scalar_prefetch = 0 : i64, scratch_operands = 0 : i64, tpu.core_type = #tpu.core_type<tc>, window_params = [{transform_indices = @transform_0, window_bounds = array<i64: 2, 4, 256>}, {transform_indices = @transform_1, window_bounds = array<i64: 2, 256>}, {transform_indices = @transform_2, window_bounds = array<i64: 1, 2, 4>}, {transform_indices = @transform_3, window_bounds = array<i64: 1, 2, 4>}, {transform_indices = @transform_4, window_bounds = array<i64: 1, 2, 4>}]} {
    %c0_i32 = arith.constant 0 : i32
    %0 = arith.cmpi eq, %arg1, %c0_i32 : i32
    %1 = arith.extui %0 : i1 to i32
    %c0_i32_0 = arith.constant 0 : i32
    %2 = arith.cmpi ne, %1, %c0_i32_0 : i32
    scf.if %2 {
      %cst = arith.constant 0.000000e+00 : f32
      %21 = vector.broadcast %cst : f32 to vector<1x2x4xf32>
      %c0_9 = arith.constant 0 : index
      %c0_10 = arith.constant 0 : index
      %c0_11 = arith.constant 0 : index
      %22 = vector.load %arg4[%c0_9, %c0_10, %c0_11] : memref<1x2x4xf32, #tpu.memory_space<vmem>>, vector<1x2x4xf32>
      tpu.vector_store %arg4[%c0_9, %c0_10, %c0_11], %21 {strides = array<i32>} : memref<1x2x4xf32, #tpu.memory_space<vmem>>, vector<1x2x4xf32>,
      %cst_12 = arith.constant 0.000000e+00 : f32
      %23 = vector.broadcast %cst_12 : f32 to vector<1x2x4xf32>
      %c0_13 = arith.constant 0 : index
      %c0_14 = arith.constant 0 : index
      %c0_15 = arith.constant 0 : index
      %24 = vector.load %arg5[%c0_13, %c0_14, %c0_15] : memref<1x2x4xf32, #tpu.memory_space<vmem>>, vector<1x2x4xf32>
      tpu.vector_store %arg5[%c0_13, %c0_14, %c0_15], %23 {strides = array<i32>} : memref<1x2x4xf32, #tpu.memory_space<vmem>>, vector<1x2x4xf32>,
      %cst_16 = arith.constant 0.000000e+00 : f32
      %25 = vector.broadcast %cst_16 : f32 to vector<1x2x4xf32>
      %c0_17 = arith.constant 0 : index
      %c0_18 = arith.constant 0 : index
      %c0_19 = arith.constant 0 : index
      %26 = vector.load %arg6[%c0_17, %c0_18, %c0_19] : memref<1x2x4xf32, #tpu.memory_space<vmem>>, vector<1x2x4xf32>
      tpu.vector_store %arg6[%c0_17, %c0_18, %c0_19], %25 {strides = array<i32>} : memref<1x2x4xf32, #tpu.memory_space<vmem>>, vector<1x2x4xf32>,
    } else {
    }
    %c1_i32 = arith.constant 1 : i32
    %3 = arith.muli %arg0, %c1_i32 : i32
    %4 = arith.addi %3, %arg1 : i32
    %c256_i32 = arith.constant 256 : i32
    %5 = arith.muli %4, %c256_i32 : i32
    %c0 = arith.constant 0 : index
    %c0_1 = arith.constant 0 : index
    %c0_2 = arith.constant 0 : index
    %6 = vector.load %arg2[%c0, %c0_1, %c0_2] : memref<2x4x256xf32, #tpu.memory_space<vmem>>, vector<2x4x256xf32>
    %c0_3 = arith.constant 0 : index
    %c0_4 = arith.constant 0 : index
    %7 = vector.load %arg3[%c0_3, %c0_4] : memref<2x256xi8, #tpu.memory_space<vmem>>, vector<2x256xi8>
    %8 = arith.extsi %7 : vector<2x256xi8> to vector<2x256xi32>
    %9 = tpu.iota {dimensions = array<i32: 1>} : vector<1x4x1xi32>
    %10 = vector.shape_cast %8 : vector<2x256xi32> to vector<2x1x256xi32>
    %11 = vector.broadcast %9 : vector<1x4x1xi32> to vector<2x4x256xi32>
    %12 = vector.broadcast %10 : vector<2x1x256xi32> to vector<2x4x256xi32>
    %13 = arith.cmpi eq, %11, %12 : vector<2x4x256xi32>
    %c256_i32_5 = arith.constant 256 : i32
    %14 = arith.addi %5, %c256_i32_5 : i32
    %c256_i32_6 = arith.constant 256 : i32
    %15 = arith.cmpi sle, %14, %c256_i32_6 : i32
    %16 = arith.extui %15 : i1 to i32
    %c0_i32_7 = arith.constant 0 : i32
    %17 = arith.cmpi ne, %16, %c0_i32_7 : i32
    scf.if %17 {
      %c0_9 = arith.constant 0 : index
      %c0_10 = arith.constant 0 : index
      %c0_11 = arith.constant 0 : index
      %21 = vector.load %arg4[%c0_9, %c0_10, %c0_11] : memref<1x2x4xf32, #tpu.memory_space<vmem>>, vector<1x2x4xf32>
      %cst = arith.constant 0.000000e+00 : f32
      %22 = vector.broadcast %cst : f32 to vector<2x4x256xf32>
      %23 = arith.select %13, %6, %22 : vector<2x4x256xi1>, vector<2x4x256xf32>
      %cst_12 = arith.constant dense<0.000000e+00> : vector<2x4xf32>
      %24 = vector.multi_reduction <add>, %23, %cst_12 [2] : vector<2x4x256xf32> to vector<2x4xf32>
      %25 = vector.shape_cast %24 : vector<2x4xf32> to vector<1x2x4xf32>
      %26 = arith.addf %21, %25 : vector<1x2x4xf32>
      %c0_13 = arith.constant 0 : index
      %c0_14 = arith.constant 0 : index
      %c0_15 = arith.constant 0 : index
      %27 = vector.load %arg4[%c0_13, %c0_14, %c0_15] : memref<1x2x4xf32, #tpu.memory_space<vmem>>, vector<1x2x4xf32>
      tpu.vector_store %arg4[%c0_13, %c0_14, %c0_15], %26 {strides = array<i32>} : memref<1x2x4xf32, #tpu.memory_space<vmem>>, vector<1x2x4xf32>,
      %c0_16 = arith.constant 0 : index
      %c0_17 = arith.constant 0 : index
      %c0_18 = arith.constant 0 : index
      %28 = vector.load %arg5[%c0_16, %c0_17, %c0_18] : memref<1x2x4xf32, #tpu.memory_space<vmem>>, vector<1x2x4xf32>
      %cst_19 = arith.constant dense<0.000000e+00> : vector<2x4xf32>
      %29 = vector.multi_reduction <add>, %6, %cst_19 [2] : vector<2x4x256xf32> to vector<2x4xf32>
      %30 = vector.shape_cast %29 : vector<2x4xf32> to vector<1x2x4xf32>
      %31 = arith.addf %28, %30 : vector<1x2x4xf32>
      %c0_20 = arith.constant 0 : index
      %c0_21 = arith.constant 0 : index
      %c0_22 = arith.constant 0 : index
      %32 = vector.load %arg5[%c0_20, %c0_21, %c0_22] : memref<1x2x4xf32, #tpu.memory_space<vmem>>, vector<1x2x4xf32>
      tpu.vector_store %arg5[%c0_20, %c0_21, %c0_22], %31 {strides = array<i32>} : memref<1x2x4xf32, #tpu.memory_space<vmem>>, vector<1x2x4xf32>,
      %c0_23 = arith.constant 0 : index
      %c0_24 = arith.constant 0 : index
      %c0_25 = arith.constant 0 : index
      %33 = vector.load %arg6[%c0_23, %c0_24, %c0_25] : memref<1x2x4xf32, #tpu.memory_space<vmem>>, vector<1x2x4xf32>
      %34 = arith.extui %13 : vector<2x4x256xi1> to vector<2x4x256xi32>
      %35 = arith.sitofp %34 : vector<2x4x256xi32> to vector<2x4x256xf32>
      %cst_26 = arith.constant dense<0.000000e+00> : vector<2x4xf32>
      %36 = vector.multi_reduction <add>, %35, %cst_26 [2] : vector<2x4x256xf32> to vector<2x4xf32>
      %37 = vector.shape_cast %36 : vector<2x4xf32> to vector<1x2x4xf32>
      %38 = arith.addf %33, %37 : vector<1x2x4xf32>
      %c0_27 = arith.constant 0 : index
      %c0_28 = arith.constant 0 : index
      %c0_29 = arith.constant 0 : index
      %39 = vector.load %arg6[%c0_27, %c0_28, %c0_29] : memref<1x2x4xf32, #tpu.memory_space<vmem>>, vector<1x2x4xf32>
      tpu.vector_store %arg6[%c0_27, %c0_28, %c0_29], %38 {strides = array<i32>} : memref<1x2x4xf32, #tpu.memory_space<vmem>>, vector<1x2x4xf32>,
    } else {
    }
    %true = arith.constant true
    %18 = arith.xori %15, %true : i1
    %19 = arith.extui %18 : i1 to i32
    %c0_i32_8 = arith.constant 0 : i32
    %20 = arith.cmpi ne, %19, %c0_i32_8 : i32
    scf.if %20 {
      %21 = tpu.iota {dimensions = array<i32: 2>} : vector<1x1x256xi32>
      %c256_i32_9 = arith.constant 256 : i32
      %22 = arith.subi %c256_i32_9, %5 : i32
      %23 = vector.broadcast %22 : i32 to vector<1x1x256xi32>
      %24 = arith.cmpi slt, %21, %23 : vector<1x1x256xi32>
      %cst = arith.constant 0.000000e+00 : f32
      %25 = vector.shape_cast %24 : vector<1x1x256xi1> to vector<1x1x256xi1>
      %26 = vector.broadcast %25 : vector<1x1x256xi1> to vector<2x4x256xi1>
      %27 = vector.broadcast %cst : f32 to vector<2x4x256xf32>
      %28 = arith.select %26, %6, %27 : vector<2x4x256xi1>, vector<2x4x256xf32>
      %29 = vector.broadcast %24 : vector<1x1x256xi1> to vector<2x4x256xi1>
      %30 = arith.andi %13, %29 : vector<2x4x256xi1>
      %c0_10 = arith.constant 0 : index
      %c0_11 = arith.constant 0 : index
      %c0_12 = arith.constant 0 : index
      %31 = vector.load %arg4[%c0_10, %c0_11, %c0_12] : memref<1x2x4xf32, #tpu.memory_space<vmem>>, vector<1x2x4xf32>
      %cst_13 = arith.constant 0.000000e+00 : f32
      %32 = vector.broadcast %cst_13 : f32 to vector<2x4x256xf32>
      %33 = arith.select %30, %28, %32 : vector<2x4x256xi1>, vector<2x4x256xf32>
      %cst_14 = arith.constant dense<0.000000e+00> : vector<2x4xf32>
      %34 = vector.multi_reduction <add>, %33, %cst_14 [2] : vector<2x4x256xf32> to vector<2x4xf32>
      %35 = vector.shape_cast %34 : vector<2x4xf32> to vector<1x2x4xf32>
      %36 = arith.addf %31, %35 : vector<1x2x4xf32>
      %c0_15 = arith.constant 0 : index
      %c0_16 = arith.constant 0 : index
      %c0_17 = arith.constant 0 : index
      %37 = vector.load %arg4[%c0_15, %c0_16, %c0_17] : memref<1x2x4xf32, #tpu.memory_space<vmem>>, vector<1x2x4xf32>
      tpu.vector_store %arg4[%c0_15, %c0_16, %c0_17], %36 {strides = array<i32>} : memref<1x2x4xf32, #tpu.memory_space<vmem>>, vector<1x2x4xf32>,
      %c0_18 = arith.constant 0 : index
      %c0_19 = arith.constant 0 : index
      %c0_20 = arith.constant 0 : index
      %38 = vector.load %arg5[%c0_18, %c0_19, %c0_20] : memref<1x2x4xf32, #tpu.memory_space<vmem>>, vector<1x2x4xf32>
      %cst_21 = arith.constant dense<0.000000e+00> : vector<2x4xf32>
      %39 = vector.multi_reduction <add>, %28, %cst_21 [2] : vector<2x4x256xf32> to vector<2x4xf32>
      %40 = vector.shape_cast %39 : vector<2x4xf32> to vector<1x2x4xf32>
      %41 = arith.addf %38, %40 : vector<1x2x4xf32>
      %c0_22 = arith.constant 0 : index
      %c0_23 = arith.constant 0 : index
      %c0_24 = arith.constant 0 : index
      %42 = vector.load %arg5[%c0_22, %c0_23, %c0_24] : memref<1x2x4xf32, #tpu.memory_space<vmem>>, vector<1x2x4xf32>
      tpu.vector_store %arg5[%c0_22, %c0_23, %c0_24], %41 {strides = array<i32>} : memref<1x2x4xf32, #tpu.memory_space<vmem>>, vector<1x2x4xf32>,
      %c0_25 = arith.constant 0 : index
      %c0_26 = arith.constant 0 : index
      %c0_27 = arith.constant 0 : index
      %43 = vector.load %arg6[%c0_25, %c0_26, %c0_27] : memref<1x2x4xf32, #tpu.memory_space<vmem>>, vector<1x2x4xf32>
      %44 = arith.extui %30 : vector<2x4x256xi1> to vector<2x4x256xi32>
      %45 = arith.sitofp %44 : vector<2x4x256xi32> to vector<2x4x256xf32>
      %cst_28 = arith.constant dense<0.000000e+00> : vector<2x4xf32>
      %46 = vector.multi_reduction <add>, %45, %cst_28 [2] : vector<2x4x256xf32> to vector<2x4xf32>
      %47 = vector.shape_cast %46 : vector<2x4xf32> to vector<1x2x4xf32>
      %48 = arith.addf %43, %47 : vector<1x2x4xf32>
      %c0_29 = arith.constant 0 : index
      %c0_30 = arith.constant 0 : index
      %c0_31 = arith.constant 0 : index
      %49 = vector.load %arg6[%c0_29, %c0_30, %c0_31] : memref<1x2x4xf32, #tpu.memory_space<vmem>>, vector<1x2x4xf32>
      tpu.vector_store %arg6[%c0_29, %c0_30, %c0_31], %48 {strides = array<i32>} : memref<1x2x4xf32, #tpu.memory_space<vmem>>, vector<1x2x4xf32>,
    } else {
    }
    return
  }
  func.func @transform_0(%arg0: i32, %arg1: i32) -> (i32, i32, i32) {
    %c1_i32 = arith.constant 1 : i32
    %0 = arith.muli %arg0, %c1_i32 : i32
    %1 = arith.addi %0, %arg1 : i32
    %c0_i32 = arith.constant 0 : i32
    %2 = arith.minsi %1, %c0_i32 : i32
    %c0_i32_0 = arith.constant 0 : i32
    %c0_i32_1 = arith.constant 0 : i32
    %c0_i32_2 = arith.constant 0 : i32
    return %c0_i32_0, %c0_i32_1, %2 : i32, i32, i32
  }
  func.func @transform_1(%arg0: i32, %arg1: i32) -> (i32, i32) {
    %c1_i32 = arith.constant 1 : i32
    %0 = arith.muli %arg0, %c1_i32 : i32
    %1 = arith.addi %0, %arg1 : i32
    %c0_i32 = arith.constant 0 : i32
    %2 = arith.minsi %1, %c0_i32 : i32
    %c0_i32_0 = arith.constant 0 : i32
    %c0_i32_1 = arith.constant 0 : i32
    return %c0_i32_0, %2 : i32, i32
  }
  func.func @transform_2(%arg0: i32, %arg1: i32) -> (i32, i32, i32) {
    %c0_i32 = arith.constant 0 : i32
    %c0_i32_0 = arith.constant 0 : i32
    %c0_i32_1 = arith.constant 0 : i32
    return %arg0, %c0_i32, %c0_i32_0 : i32, i32, i32
  }
  func.func @transform_3(%arg0: i32, %arg1: i32) -> (i32, i32, i32) {
    %c0_i32 = arith.constant 0 : i32
    %c0_i32_0 = arith.constant 0 : i32
    %c0_i32_1 = arith.constant 0 : i32
    return %arg0, %c0_i32, %c0_i32_0 : i32, i32, i32
  }
  func.func @transform_4(%arg0: i32, %arg1: i32) -> (i32, i32, i32) {
    %c0_i32 = arith.constant 0 : i32
    %c0_i32_0 = arith.constant 0 : i32
    %c0_i32_1 = arith.constant 0 : i32
    return %arg0, %c0_i32, %c0_i32_0 : i32, i32, i32
  }
}

</mosaic_0001>

<llo_original>
// kernel: tpu_custom_call.1
$region0: #{tpu_custom_call.1}
  #allocation0 [shape = 'u32[]', space=smem, size = 0x4, offset = 0x4, fixed_abs, tag = 'smem constant byte address 0x4 - core index']
  #allocation1 [shape = 'u32[144,128]{1,0:T(1,128)}', space=vmem, size = 0x12000, scoped, tag = 'internal scratch']
  %s0 = inlined_call_operand.hbm [shape: f32[2,4,256], index: 0, kind: input, shape index: {}]
  %s1 = inlined_call_operand.vmem [shape: s8[2,256], index: 1, kind: input, shape index: {}]
  %s2 = inlined_call_operand.hbm [shape: f32[1,2,4], index: 2, kind: output, shape index: {0}]
  %s3 = inlined_call_operand.hbm [shape: f32[1,2,4], index: 3, kind: output, shape index: {1}]
  %s4 = inlined_call_operand.hbm [shape: f32[1,2,4], index: 4, kind: output, shape index: {2}]
  %5 = xla_tuple %s2, %s3, %s4
  %s6 = sld [smem:[#allocation0]]
  $region50: #{tpu_custom_call.1} parent=0
    _
  %s8 = ssub.s32 1, %s6
  %s9 = scalar_select 0, %s8, %s6
  $region1: #{tpu_custom_call.1} parent=0
    #allocation2 [shape = 'u8[8192]{0}', space=vmem, size = 0x2000, scoped, tag = 'input window, operand 0, single buffered']
    #allocation3 [shape = 's32[1]{0}', space=sflag, size = 0x4, scoped, tag = 'scoped memory for tpu_custom_call.1']
    #allocation4 [shape = 's32[1]{0}', space=sflag, size = 0x4, scoped, tag = 'scoped memory for tpu_custom_call.1']
    #allocation5 [shape = 'u8[1024]{0}', space=vmem, size = 0x400, scoped, tag = 'output window, operand 0, single buffered']
    #allocation6 [shape = 'u8[1024]{0}', space=vmem, size = 0x400, scoped, tag = 'output window, operand 1, single buffered']
    #allocation7 [shape = 's32[1]{0}', space=sflag, size = 0x4, scoped, tag = 'scoped memory for tpu_custom_call.1']
    #allocation8 [shape = 'u8[1024]{0}', space=vmem, size = 0x400, scoped, tag = 'output window, operand 2, single buffered']
    %10 = vsyncpa [#allocation3], 0
    %11 = vsyncpa [#allocation4], 0
    %12 = vsyncpa [#allocation7], 0
    // Predicated region
    $region2: #{tpu_custom_call.1} parent=1 // pred_check
      _
    $region3: #{tpu_custom_call.1} parent=1 // pred_check_branch
      %14 = sbr.rel (0) target = $region5
    $region4: #{tpu_custom_call.1} parent=1 // pred_region
      %s15 = sadd.s32 0, 0
      %p16 = scmp.lt.s32.totalorder %s15, 0
      %s17 = scalar_select %p16, %s15, 0
      %s18 = smul.u32 2, %s17
      %s20 = ssub.s32 256, 256
      %21 = vsyncadd [#allocation3], %s20
      %s22 = smul.addr %s18, 64
      %s23 = scalar_lea.hbm %s0, %s22
      %s24 = sshll.u32 [#allocation2], 4
      %s25 = int_to_ptr.vmem [resolvable:$true] %s24
      %30 = dma.hbm_to_vmem [thread:$0]  %s23, 256, %s25, [#allocation3], 128, 128, 8
    $region5: #{tpu_custom_call.1} parent=1 // pred_fallthru
      _
    // Predicated region
    $region6: #{tpu_custom_call.1} parent=1 // pred_check
      _
    $region7: #{tpu_custom_call.1} parent=1 // pred_check_branch
      %32 = sbr.rel (0) target = $region9
    $region8: #{tpu_custom_call.1} parent=1 // pred_region
      %s33 = sadd.s32 0, 0
      %p34 = scmp.lt.s32.totalorder %s33, 0
      %s35 = scalar_select %p34, %s33, 0
      %s36 = smul.u32 2, %s35
      %p37 = scmp.lt.s32.totalorder %s36, 1
      %s38 = scalar_select %p37, %s36, 1
      %s39 = scalar_lea.vmem %s1, %s38
      %s40 = sadd.s32 0, 0
      %p41 = scmp.lt.s32.totalorder %s40, 0
      %s42 = scalar_select %p41, %s40, 0
      %s43 = smul.u32 2, %s42
    $region9: #{tpu_custom_call.1} parent=1 // pred_fallthru
      _
    // Predicated region
    $region10: #{tpu_custom_call.1} parent=1 // pred_check
      _
    $region11: #{tpu_custom_call.1} parent=1 // pred_check_branch
      %45 = sbr.rel (0) target = $region13
    $region12: #{tpu_custom_call.1} parent=1 // pred_region
      %46 = dma.done [#allocation3], 256
    $region13: #{tpu_custom_call.1} parent=1 // pred_fallthru
      _
    %s47 = sadd.s32 0, 0
    %p48 = scmp.lt.s32.totalorder %s47, 0
    %s49 = scalar_select %p48, %s47, 0
    %s50 = smul.u32 2, %s49
    %p51 = scmp.lt.s32.totalorder %s50, 1
    %s52 = scalar_select %p51, %s50, 1
    %s53 = scalar_lea.vmem %s1, %s52
    %s54 = sadd.s32 0, 0
    %p55 = scmp.lt.s32.totalorder %s54, 0
    %s56 = scalar_select %p55, %s54, 0
    %s57 = smul.u32 2, %s56
    %s58 = sadd.s32 0, 0
    %p59 = scmp.lt.s32.totalorder %s58, 0
    %s60 = scalar_select %p59, %s58, 0
    %s61 = smul.u32 2, %s60
    %p62 = scmp.lt.s32.totalorder %s61, 1
    %s63 = scalar_select %p62, %s61, 1
    %s64 = scalar_lea.vmem %s1, %s63
    %s65 = sadd.s32 0, 0
    %p66 = scmp.lt.s32.totalorder %s65, 0
    %s67 = scalar_select %p66, %s65, 0
    %s68 = smul.u32 2, %s67
    %p69 = scmp.eq.s32.totalorder 0, 0
    // Predicated region
    $region14: #{tpu_custom_call.1} parent=1 // pred_check
      %p70 = pneg %p69
    $region15: #{tpu_custom_call.1} parent=1 // pred_check_branch
      %72 = sbr.rel (%p70) target = $region17
    $region16: #{tpu_custom_call.1} parent=1 // pred_region
      %vm73 = vcmask 25600
      %74 = vst.msk [vmem:[#allocation5] sm:$0x3] %vm73, 0.0
      %75 = vst.msk [vmem:[#allocation6] sm:$0x3] %vm73, 0.0
      %76 = vst.msk [vmem:[#allocation8] sm:$0x3] %vm73, 0.0
    $region17: #{tpu_custom_call.1} parent=1 // pred_fallthru
      _
    %s77 = sadd.s32 0, 0
    %s78 = smul.u32 %s77, 256
    %v79 = vld [vmem:[#allocation2] sm:$0xff]
    %v80 = vld [vmem:[#allocation2 + $0x8] sm:$0xff]
    %v81 = vld [vmem:[%s64] sm:$0x3]
    %v82 = vunpack.c.0.s8 %v81
    %v83 = vlaneseq
    %v84 = vshrl.u32 %v83, 7
    %v86 = vunpack.c.l.s4 1966171168
    %v87 = vunpack.c.0.s8 %v86
    %v88 = vlaneseq
    %v89 = vshrl.u32 %v88, 7
    %v90 = vsub.s32 %v87, %v89
    %v91 = vrot.slane %v82, %v90
    %v92 = vcombine.high %v91, %v91
    %v94 = vunpack.c.l.s4 1966171168
    %v95 = vunpack.c.0.s8 %v94
    %v96 = vlaneseq
    %v97 = vshrl.u32 %v96, 7
    %v98 = vsub.s32 %v95, %v97
    %v99 = vrot.slane %v91, %v98
    %v101 = vunpack.c.l.s4 1966171168
    %v102 = vunpack.c.0.s8 %v101
    %v103 = vlaneseq
    %v104 = vshrl.u32 %v103, 7
    %v105 = vsub.s32 %v102, %v104
    %v106 = vrot.slane %v92, %v105
    %v107 = vlaneseq
    %v108 = vshrl.u32 %v107, 7
    %v109 = vsub.s32 0, %v108
    %v110 = vrot.slane %v99, %v109
    %v111 = vlaneseq
    %v112 = vshrl.u32 %v111, 7
    %v113 = vsub.s32 1, %v112
    %v114 = vrot.slane %v99, %v113
    %v115 = vlaneseq
    %v116 = vshrl.u32 %v115, 7
    %v117 = vsub.s32 0, %v116
    %v118 = vrot.slane %v106, %v117
    %v119 = vlaneseq
    %v120 = vshrl.u32 %v119, 7
    %v121 = vsub.s32 1, %v120
    %v122 = vrot.slane %v106, %v121
    %vm123 = vcmp.eq.s32.totalorder %v84, %v110
    %vm124 = vcmp.eq.s32.totalorder %v84, %v114
    %vm125 = vcmp.eq.s32.totalorder %v84, %v118
    %vm126 = vcmp.eq.s32.totalorder %v84, %v122
    %s127 = sadd.s32 %s78, 256
    %p128 = scmp.le.s32.totalorder %s127, 256
    // Predicated region
    $region18: #{tpu_custom_call.1} parent=1 // pred_check
      %p129 = pneg %p128
    $region19: #{tpu_custom_call.1} parent=1 // pred_check_branch
      %131 = sbr.rel (%p129) target = $region21
    $region20: #{tpu_custom_call.1} parent=1 // pred_region
      %v132 = vld [vmem:[#allocation5] sm:$0x3]
      %v135 = vcombine.high %v79, %v79
      %v136 = vcombine.high %v80, %v80
      %v139 = vsel %vm123, %v79, 0.0
      %v140 = vsel %vm124, %v135, 0.0
      %v141 = vsel %vm125, %v80, 0.0
      %v142 = vsel %vm126, %v136, 0.0
      %vm143 = vcmask 1043456
      %v144 = vsel %vm143, %v139, 0.0
      %v145 = vsel %vm143, %v140, 0.0
      %v146 = vadd.f32 %v144, %v145
      %147 = vadd.xlane.f32.xlu0 %v146
      %v148 = vpop.xlane.xlu0 %147
      %v149 = vsel %vm143, %v141, 0.0
      %v150 = vsel %vm143, %v142, 0.0
      %v151 = vadd.f32 %v149, %v150
      %152 = vadd.xlane.f32.xlu0 %v151
      %v153 = vpop.xlane.xlu0 %152
      %v156 = vlaneseq
      %v157 = vand.u32 %v156, 127
      %v158 = vlaneseq
      %v159 = vshrl.u32 %v158, 7
      %v160 = vsub.s32 %v157, %v159
      %v161 = vrot.slane %v148, %v160
      %v162 = vlaneseq
      %v163 = vshrl.u32 %v162, 7
      %v164 = vsub.s32 %v157, %v163
      %v165 = vrot.slane %v153, %v164
      %vm166 = vcmask 1041409
      %v167 = vsel %vm166, %v165, %v161
      %v169 = vadd.f32 %v132, %v167
      %vm170 = vcmask 25600
      %171 = vst.msk [vmem:[#allocation5] sm:$0x3] %vm170, %v169
      %v172 = vld [vmem:[#allocation6] sm:$0x3]
      %v173 = vsel %vm143, %v79, 0.0
      %v174 = vsel %vm143, %v135, 0.0
      %v175 = vadd.f32 %v173, %v174
      %176 = vadd.xlane.f32.xlu0 %v175
      %v177 = vpop.xlane.xlu0 %176
      %v178 = vsel %vm143, %v80, 0.0
      %v179 = vsel %vm143, %v136, 0.0
      %v180 = vadd.f32 %v178, %v179
      %181 = vadd.xlane.f32.xlu0 %v180
      %v182 = vpop.xlane.xlu0 %181
      %v185 = vlaneseq
      %v186 = vshrl.u32 %v185, 7
      %v187 = vsub.s32 %v157, %v186
      %v188 = vrot.slane %v177, %v187
      %v189 = vlaneseq
      %v190 = vshrl.u32 %v189, 7
      %v191 = vsub.s32 %v157, %v190
      %v192 = vrot.slane %v182, %v191
      %v193 = vsel %vm166, %v192, %v188
      %v195 = vadd.f32 %v172, %v193
      %196 = vst.msk [vmem:[#allocation6] sm:$0x3] %vm170, %v195
      %v197 = vld [vmem:[#allocation8] sm:$0x3]
      %v198 = vsel %vm123, 1, 0
      %v199 = vsel %vm124, 1, 0
      %v200 = vsel %vm125, 1, 0
      %v201 = vsel %vm126, 1, 0
      %v202 = vcvt.s32.f32 %v198
      %v203 = vcvt.s32.f32 %v199
      %v204 = vcvt.s32.f32 %v200
      %v205 = vcvt.s32.f32 %v201
      %v206 = vsel %vm143, %v202, 0.0
      %v207 = vsel %vm143, %v203, 0.0
      %v208 = vadd.f32 %v206, %v207
      %209 = vadd.xlane.f32.xlu0 %v208
      %v210 = vpop.xlane.xlu0 %209
      %v211 = vsel %vm143, %v204, 0.0
      %v212 = vsel %vm143, %v205, 0.0
      %v213 = vadd.f32 %v211, %v212
      %214 = vadd.xlane.f32.xlu0 %v213
      %v215 = vpop.xlane.xlu0 %214
      %v218 = vlaneseq
      %v219 = vshrl.u32 %v218, 7
      %v220 = vsub.s32 %v157, %v219
      %v221 = vrot.slane %v210, %v220
      %v222 = vlaneseq
      %v223 = vshrl.u32 %v222, 7
      %v224 = vsub.s32 %v157, %v223
      %v225 = vrot.slane %v215, %v224
      %v226 = vsel %vm166, %v225, %v221
      %v228 = vadd.f32 %v197, %v226
      %229 = vst.msk [vmem:[#allocation8] sm:$0x3] %vm170, %v228
    $region21: #{tpu_custom_call.1} parent=1 // pred_fallthru
      _
    %p230 = scmp.gt.s32.totalorder %s127, 256
    // Predicated region
    $region22: #{tpu_custom_call.1} parent=1 // pred_check
      %p231 = pneg %p230
    $region23: #{tpu_custom_call.1} parent=1 // pred_check_branch
      %233 = sbr.rel (%p231) target = $region25
    $region24: #{tpu_custom_call.1} parent=1 // pred_region
      %v234 = vlaneseq
      %v235 = vand.u32 %v234, 127
      %v236 = vadd.s32 %v235, 128
      %s237 = ssub.s32 256, %s78
      %v238 = vstv %s237
      %vm239 = vcmp.lt.s32.totalorder %v235, %v238
      %vm240 = vcmp.lt.s32.totalorder %v236, %v238
      %v241 = vsel %vm239, 1, 0
      %v242 = vsel %vm240, 1, 0
      %vm243 = vcmp.eq.s32.totalorder %v241, 1
      %vm244 = vcmp.eq.s32.totalorder %v242, 1
      %v247 = vcombine.high %v79, %v79
      %v248 = vcombine.high %v80, %v80
      %v251 = vsel %vm243, %v79, 0.0
      %v252 = vsel %vm244, %v247, 0.0
      %v253 = vsel %vm243, %v80, 0.0
      %v254 = vsel %vm244, %v248, 0.0
      %vm255 = vmand %vm123, %vm243
      %vm256 = vmand %vm124, %vm244
      %vm257 = vmand %vm125, %vm243
      %vm258 = vmand %vm126, %vm244
      %v259 = vld [vmem:[#allocation5] sm:$0x3]
      %v260 = vsel %vm255, %v251, 0.0
      %v261 = vsel %vm256, %v252, 0.0
      %v262 = vsel %vm257, %v253, 0.0
      %v263 = vsel %vm258, %v254, 0.0
      %vm264 = vcmask 1043456
      %v265 = vsel %vm264, %v260, 0.0
      %v266 = vsel %vm264, %v261, 0.0
      %v267 = vadd.f32 %v265, %v266
      %268 = vadd.xlane.f32.xlu0 %v267
      %v269 = vpop.xlane.xlu0 %268
      %v270 = vsel %vm264, %v262, 0.0
      %v271 = vsel %vm264, %v263, 0.0
      %v272 = vadd.f32 %v270, %v271
      %273 = vadd.xlane.f32.xlu0 %v272
      %v274 = vpop.xlane.xlu0 %273
      %v277 = vlaneseq
      %v278 = vshrl.u32 %v277, 7
      %v279 = vsub.s32 %v235, %v278
      %v280 = vrot.slane %v269, %v279
      %v281 = vlaneseq
      %v282 = vshrl.u32 %v281, 7
      %v283 = vsub.s32 %v235, %v282
      %v284 = vrot.slane %v274, %v283
      %vm285 = vcmask 1041409
      %v286 = vsel %vm285, %v284, %v280
      %v288 = vadd.f32 %v259, %v286
      %vm289 = vcmask 25600
      %290 = vst.msk [vmem:[#allocation5] sm:$0x3] %vm289, %v288
      %v291 = vld [vmem:[#allocation6] sm:$0x3]
      %v292 = vsel %vm264, %v251, 0.0
      %v293 = vsel %vm264, %v252, 0.0
      %v294 = vadd.f32 %v292, %v293
      %295 = vadd.xlane.f32.xlu0 %v294
      %v296 = vpop.xlane.xlu0 %295
      %v297 = vsel %vm264, %v253, 0.0
      %v298 = vsel %vm264, %v254, 0.0
      %v299 = vadd.f32 %v297, %v298
      %300 = vadd.xlane.f32.xlu0 %v299
      %v301 = vpop.xlane.xlu0 %300
      %v304 = vlaneseq
      %v305 = vshrl.u32 %v304, 7
      %v306 = vsub.s32 %v235, %v305
      %v307 = vrot.slane %v296, %v306
      %v308 = vlaneseq
      %v309 = vshrl.u32 %v308, 7
      %v310 = vsub.s32 %v235, %v309
      %v311 = vrot.slane %v301, %v310
      %v312 = vsel %vm285, %v311, %v307
      %v314 = vadd.f32 %v291, %v312
      %315 = vst.msk [vmem:[#allocation6] sm:$0x3] %vm289, %v314
      %v316 = vld [vmem:[#allocation8] sm:$0x3]
      %v317 = vsel %vm255, 1, 0
      %v318 = vsel %vm256, 1, 0
      %v319 = vsel %vm257, 1, 0
      %v320 = vsel %vm258, 1, 0
      %v321 = vcvt.s32.f32 %v317
      %v322 = vcvt.s32.f32 %v318
      %v323 = vcvt.s32.f32 %v319
      %v324 = vcvt.s32.f32 %v320
      %v325 = vsel %vm264, %v321, 0.0
      %v326 = vsel %vm264, %v322, 0.0
      %v327 = vadd.f32 %v325, %v326
      %328 = vadd.xlane.f32.xlu0 %v327
      %v329 = vpop.xlane.xlu0 %328
      %v330 = vsel %vm264, %v323, 0.0
      %v331 = vsel %vm264, %v324, 0.0
      %v332 = vadd.f32 %v330, %v331
      %333 = vadd.xlane.f32.xlu0 %v332
      %v334 = vpop.xlane.xlu0 %333
      %v337 = vlaneseq
      %v338 = vshrl.u32 %v337, 7
      %v339 = vsub.s32 %v235, %v338
      %v340 = vrot.slane %v329, %v339
      %v341 = vlaneseq
      %v342 = vshrl.u32 %v341, 7
      %v343 = vsub.s32 %v235, %v342
      %v344 = vrot.slane %v334, %v343
      %v345 = vsel %vm285, %v344, %v340
      %v347 = vadd.f32 %v316, %v345
      %348 = vst.msk [vmem:[#allocation8] sm:$0x3] %vm289, %v347
    $region25: #{tpu_custom_call.1} parent=1 // pred_fallthru
      _
    // Predicated region
    $region26: #{tpu_custom_call.1} parent=1 // pred_check
      _
    $region27: #{tpu_custom_call.1} parent=1 // pred_check_branch
      %350 = sbr.rel (0) target = $region29
    $region28: #{tpu_custom_call.1} parent=1 // pred_region
      %s352 = ssub.s32 32, 32
      %353 = vsyncadd [#allocation4], %s352
      %s355 = sshll.u32 [#allocation5], 4
      %s356 = int_to_ptr.vmem [resolvable:$true] %s355
      %358 = dma.vmem_to_hbm [thread:$0]  %s356, 32, %s2, [#allocation4]
    $region29: #{tpu_custom_call.1} parent=1 // pred_fallthru
      _
    // Predicated region
    $region30: #{tpu_custom_call.1} parent=1 // pred_check
      _
    $region31: #{tpu_custom_call.1} parent=1 // pred_check_branch
      %360 = sbr.rel (0) target = $region33
    $region32: #{tpu_custom_call.1} parent=1 // pred_region
      %s362 = ssub.s32 32, 32
      %363 = vsyncadd [#allocation7], %s362
      %s365 = sshll.u32 [#allocation6], 4
      %s366 = int_to_ptr.vmem [resolvable:$true] %s365
      %368 = dma.vmem_to_hbm [thread:$0]  %s366, 32, %s3, [#allocation7]
    $region33: #{tpu_custom_call.1} parent=1 // pred_fallthru
      _
    // Predicated region
    $region34: #{tpu_custom_call.1} parent=1 // pred_check
      _
    $region35: #{tpu_custom_call.1} parent=1 // pred_check_branch
      %370 = sbr.rel (0) target = $region37
    $region36: #{tpu_custom_call.1} parent=1 // pred_region
      %s372 = ssub.s32 32, 32
      %373 = vsyncadd [#allocation7], %s372
      %s375 = sshll.u32 [#allocation8], 4
      %s376 = int_to_ptr.vmem [resolvable:$true] %s375
      %378 = dma.vmem_to_hbm [thread:$0]  %s376, 32, %s4, [#allocation7]
    $region37: #{tpu_custom_call.1} parent=1 // pred_fallthru
      _
    // Predicated region
    $region38: #{tpu_custom_call.1} parent=1 // pred_check
      _
    $region39: #{tpu_custom_call.1} parent=1 // pred_check_branch
      %380 = sbr.rel (0) target = $region41
    $region40: #{tpu_custom_call.1} parent=1 // pred_region
      %381 = dma.done [#allocation4], 32
    $region41: #{tpu_custom_call.1} parent=1 // pred_fallthru
      _
    // Predicated region
    $region42: #{tpu_custom_call.1} parent=1 // pred_check
      _
    $region43: #{tpu_custom_call.1} parent=1 // pred_check_branch
      %383 = sbr.rel (0) target = $region45
    $region44: #{tpu_custom_call.1} parent=1 // pred_region
      %384 = dma.done [#allocation7], 32
    $region45: #{tpu_custom_call.1} parent=1 // pred_fallthru
      _
    // Predicated region
    $region46: #{tpu_custom_call.1} parent=1 // pred_check
      _
    $region47: #{tpu_custom_call.1} parent=1 // pred_check_branch
      %386 = sbr.rel (0) target = $region49
    $region48: #{tpu_custom_call.1} parent=1 // pred_region
      %387 = dma.done [#allocation7], 32
    $region49: #{tpu_custom_call.1} parent=1 // pred_fallthru
      _
    %388 = vsyncpa [#allocation3], 1
    %389 = vsyncpa [#allocation4], 1
    %390 = vsyncpa [#allocation7], 1

</llo_original>
